<compile_context>
chip_gen: v5e
topology: v5e:2x2
jax: 0.10.0
libtpu: 0.0.40
codegen_flags: <defaults>
</compile_context>

<pallas_src>
import functools

import jax
import jax.numpy as jnp
from jax import lax
from jax.experimental import pallas as pl
from jax.experimental.pallas import tpu as pltpu

H1 = 16            # fc1 out features (fixed by the module)
H2 = 32            # fc2 out features (fixed by the module)
_LANE = 128
_CHUNK = 1024      # compute sub-chunk width (lanes) inside one grid step


def _round_up(n, m):
    return ((n + m - 1) // m) * m


def _mlp_kernel(x_ref, p_ref, o_ref, *, K, OUT, r2, r3, tb, chunk):
    # Packed, resident parameters: static slices, loaded once per grid step
    # (row offsets r2/r3 are multiples of 8, so slices sit on sublane-tile
    # boundaries).  Biases are stored as columns so they broadcast over lanes.
    w1 = p_ref[0:H1, 0:K]                 # (16, K)
    b1 = p_ref[0:H1, K:K + 1]             # (16, 1)
    w2 = p_ref[r2:r2 + H2, 0:H1]          # (32, 16)
    b2 = p_ref[r2:r2 + H2, H1:H1 + 1]     # (32, 1)
    w3 = p_ref[r3:r3 + OUT, 0:H2]         # (OUT, 32)
    b3 = p_ref[r3:r3 + OUT, H2:H2 + 1]    # (OUT, 1)

    # Statically unrolled inner loop over lane sub-chunks keeps h1/h2 within the
    # vreg budget (chunk=1024 -> 16 + 32 vregs) while the grid-level DMA tile
    # stays large.  Static offsets -> plain aligned loads / unmasked stores.
    n_chunks = tb // chunk
    for c in range(n_chunks):
        lo = c * chunk
        xb = x_ref[lo:lo + chunk, :]                       # (chunk, K), batch on sublanes

        # fc1 on the MXU with the batch transpose fused into the dot
        # (same dimension numbers as q @ k^T): (16, K) x (chunk, K)^T -> (16, chunk).
        h1 = lax.dot_general(w1, xb, (((1,), (1,)), ((), ())),
                             preferred_element_type=jnp.float32)
        h1 = jnp.maximum(h1 + b1, 0.0)                     # (16, chunk), lane-dense

        # fc2: (32, 16) @ (16, chunk) on the MXU, f32 accumulation.
        h2 = jnp.dot(w2, h1, preferred_element_type=jnp.float32)
        h2 = jnp.maximum(h2 + b2, 0.0)                     # (32, chunk)

        # fc3: (OUT, 32) @ (32, chunk) -> lane-dense (OUT, chunk).
        h3 = jnp.dot(w3, h2, preferred_element_type=jnp.float32) + b3
        o_ref[:, lo:lo + chunk] = h3.astype(o_ref.dtype)


def _pack_params(w1, b1, w2, b2, w3, b3):
    """Pack all weights/biases into one small f32 array:
       rows [0:16)  = [w1 | b1], rows [16:48) = [w2 | b2], rows [48:48+OUT) = [w3 | b3]."""
    K = w1.shape[1]
    OUT = w3.shape[0]
    r2 = _round_up(H1, 8)
    r3 = r2 + _round_up(H2, 8)
    n_rows = r3 + _round_up(OUT, 8)
    n_cols = max(K, H1, H2) + 1
    p = jnp.zeros((n_rows, n_cols), jnp.float32)
    p = p.at[0:H1, 0:K].set(w1.astype(jnp.float32))
    p = p.at[0:H1, K].set(b1.astype(jnp.float32))
    p = p.at[r2:r2 + H2, 0:H1].set(w2.astype(jnp.float32))
    p = p.at[r2:r2 + H2, H1].set(b2.astype(jnp.float32))
    p = p.at[r3:r3 + OUT, 0:H2].set(w3.astype(jnp.float32))
    p = p.at[r3:r3 + OUT, H2].set(b3.astype(jnp.float32))
    return p, r2, r3


def _choose_tile(B, max_block_b):
    """Lane tile: power-of-two multiple of 128, sized from the padded batch so the
    grid keeps >= ~8 steps where possible (pipeline depth on v5e/v6e, and enough
    steps to shard across both TensorCores on v7x)."""
    bp = _round_up(max(B, 1), _LANE)
    tb = _LANE
    while tb < max_block_b and tb * 8 < bp:
        tb *= 2
    return tb


def bind_energy_predict(x, w1, b1, w2, b2, w3, b3, *, max_block_b=8192):
    """x: [B, input_size]; weights/biases in PyTorch nn.Linear layout.
    Returns [B, output_size]."""
    B, K = x.shape
    OUT = w3.shape[0]
    assert w1.shape == (H1, K) and w2.shape == (H2, H1) and w3.shape == (OUT, H2)

    p, r2, r3 = _pack_params(w1, b1, w2, b2, w3, b3)
    tb = _choose_tile(B, max_block_b)
    chunk = min(_CHUNK, tb)
    grid = (pl.cdiv(B, tb),)          # ragged last block handled by Pallas masking

    kernel = functools.partial(_mlp_kernel, K=K, OUT=OUT, r2=r2, r3=r3,
                               tb=tb, chunk=chunk)

    out = pl.pallas_call(
        kernel,
        out_shape=jax.ShapeDtypeStruct((OUT, B), jnp.float32),
        grid=grid,
        in_specs=[
            pl.BlockSpec((tb, K), lambda i: (i, 0)),       # x: contiguous batch rows
            pl.BlockSpec(p.shape, lambda i: (0, 0)),       # packed params (resident)
        ],
        out_specs=pl.BlockSpec((OUT, tb), lambda i: (0, i)),   # lane-dense output
        compiler_params=pltpu.CompilerParams(
            dimension_semantics=("parallel",),             # shard grid over TCs on v7x
        ),
    )(x, p)

    return out.T                                            # (B, OUT); free for OUT == 1


def init_params(key, input_size=2, output_size=1):
    """Deterministic PyTorch-style init (uniform +/- 1/sqrt(fan_in)), nn.Linear layout."""
    dims = [(input_size, H1), (H1, H2), (H2, output_size)]
    params = []
    for fan_in, fan_out in dims:
        key, kw, kb = jax.random.split(key, 3)
        bound = 1.0 / jnp.sqrt(jnp.float32(fan_in))
        w = jax.random.uniform(kw, (fan_out, fan_in), jnp.float32, -bound, bound)
        b = jax.random.uniform(kb, (fan_out,), jnp.float32, -bound, bound)
        params.extend([w, b])
    return tuple(params)


def reference_forward(x, w1, b1, w2, b2, w3, b3):
    hp = jax.lax.Precision.HIGHEST
    h = jnp.maximum(jnp.einsum("bk,hk->bh", x, w1, precision=hp) + b1, 0.0)
    h = jnp.maximum(jnp.einsum("bk,hk->bh", h, w2, precision=hp) + b2, 0.0)
    return jnp.einsum("bk,hk->bh", h, w3, precision=hp) + b3


if __name__ == "__main__":
    key = jax.random.PRNGKey(0)
    key, kx = jax.random.split(key)

    B, input_size, output_size = 8, 2, 1
    x = jax.random.normal(kx, (B, input_size), jnp.float32)
    w1, b1, w2, b2, w3, b3 = init_params(key, input_size, output_size)

    out = jax.block_until_ready(bind_energy_predict(x, w1, b1, w2, b2, w3, b3))
    ref = reference_forward(x, w1, b1, w2, b2, w3, b3)
    assert out.shape == (B, output_size), out.shape
    # Loose tolerance: the in-kernel MXU dots may use the TPU's default reduced-precision
    # f32 path while the reference runs at HIGHEST precision; structural bugs are >> 2e-2.
    assert jnp.allclose(out, ref, atol=2e-2, rtol=2e-2), "mismatch vs reference"

    # Second case: ragged batch with a multi-step grid (exercises masked trailing blocks).
    B2 = 300
    key, kx2 = jax.random.split(key)
    x2 = jax.random.normal(kx2, (B2, input_size), jnp.float32)
    out2 = jax.block_until_ready(bind_energy_predict(x2, w1, b1, w2, b2, w3, b3))
    ref2 = reference_forward(x2, w1, b1, w2, b2, w3, b3)
    assert out2.shape == (B2, output_size), out2.shape
    assert jnp.allclose(out2, ref2, atol=2e-2, rtol=2e-2), "mismatch vs reference (ragged)"

    print("KERNEL_OK")
</pallas_src>

<mosaic_0001>
module attributes {stable_mosaic.version = 11 : i64} {
  func.func @_mlp_kernel(%arg0: i32, %arg1: memref<128x2xf32, #tpu.memory_space<vmem>>, %arg2: memref<56x33xf32, #tpu.memory_space<vmem>>, %arg3: memref<1x128xf32, #tpu.memory_space<vmem>>) attributes {dimension_semantics = [#tpu.dimension_semantics<parallel>], iteration_bounds = array<i64: 1>, scalar_prefetch = 0 : i64, scratch_operands = 0 : i64, tpu.core_type = #tpu.core_type<tc>, window_params = [{transform_indices = @transform_0, window_bounds = array<i64: 128, 2>}, {pipeline_mode = #tpu.pipeline_mode<synchronous>, transform_indices = @transform_1, window_bounds = array<i64: 56, 33>}, {transform_indices = @transform_2, window_bounds = array<i64: 1, 128>}]} {
    %c0 = arith.constant 0 : index
    %c0_0 = arith.constant 0 : index
    %0 = vector.load %arg2[%c0, %c0_0] : memref<56x33xf32, #tpu.memory_space<vmem>>, vector<16x2xf32>
    %c0_1 = arith.constant 0 : index
    %c2 = arith.constant 2 : index
    %1 = vector.load %arg2[%c0_1, %c2] : memref<56x33xf32, #tpu.memory_space<vmem>>, vector<16x1xf32>
    %c16 = arith.constant 16 : index
    %c0_2 = arith.constant 0 : index
    %2 = vector.load %arg2[%c16, %c0_2] : memref<56x33xf32, #tpu.memory_space<vmem>>, vector<32x16xf32>
    %c16_3 = arith.constant 16 : index
    %c16_4 = arith.constant 16 : index
    %3 = vector.load %arg2[%c16_3, %c16_4] : memref<56x33xf32, #tpu.memory_space<vmem>>, vector<32x1xf32>
    %c48 = arith.constant 48 : index
    %c0_5 = arith.constant 0 : index
    %4 = vector.load %arg2[%c48, %c0_5] : memref<56x33xf32, #tpu.memory_space<vmem>>, vector<1x32xf32>
    %c48_6 = arith.constant 48 : index
    %c32 = arith.constant 32 : index
    %5 = vector.load %arg2[%c48_6, %c32] : memref<56x33xf32, #tpu.memory_space<vmem>>, vector<1x1xf32>
    %c0_7 = arith.constant 0 : index
    %c0_8 = arith.constant 0 : index
    %6 = vector.load %arg1[%c0_7, %c0_8] : memref<128x2xf32, #tpu.memory_space<vmem>>, vector<128x2xf32>
    %cst = arith.constant dense<0.000000e+00> : vector<16x128xf32>
    %7 = tpu.matmul %0, %6, %cst {dimension_numbers = #tpu.dot_dimension_numbers<[1], [1], [0], [0], [0, 0, 1, 0], [], []>} : vector<16x2xf32>, vector<128x2xf32>, vector<16x128xf32> -> vector<16x128xf32>
    %8 = vector.broadcast %1 : vector<16x1xf32> to vector<16x128xf32>
    %9 = arith.addf %7, %8 : vector<16x128xf32>
    %cst_9 = arith.constant 0.000000e+00 : f32
    %10 = vector.broadcast %cst_9 : f32 to vector<16x128xf32>
    %11 = arith.maximumf %9, %10 : vector<16x128xf32>
    %cst_10 = arith.constant dense<0.000000e+00> : vector<32x128xf32>
    %12 = tpu.matmul %2, %11, %cst_10 {dimension_numbers = #tpu.dot_dimension_numbers<[1], [0], [0], [1], [0, 0, 1, 1], [], []>} : vector<32x16xf32>, vector<16x128xf32>, vector<32x128xf32> -> vector<32x128xf32>
    %13 = vector.broadcast %3 : vector<32x1xf32> to vector<32x128xf32>
    %14 = arith.addf %12, %13 : vector<32x128xf32>
    %cst_11 = arith.constant 0.000000e+00 : f32
    %15 = vector.broadcast %cst_11 : f32 to vector<32x128xf32>
    %16 = arith.maximumf %14, %15 : vector<32x128xf32>
    %cst_12 = arith.constant dense<0.000000e+00> : vector<1x128xf32>
    %17 = tpu.matmul %4, %16, %cst_12 {dimension_numbers = #tpu.dot_dimension_numbers<[1], [0], [0], [1], [0, 0, 1, 1], [], []>} : vector<1x32xf32>, vector<32x128xf32>, vector<1x128xf32> -> vector<1x128xf32>
    %18 = vector.broadcast %5 : vector<1x1xf32> to vector<1x128xf32>
    %19 = arith.addf %17, %18 : vector<1x128xf32>
    %c0_13 = arith.constant 0 : index
    %c0_14 = arith.constant 0 : index
    %20 = vector.load %arg3[%c0_13, %c0_14] : memref<1x128xf32, #tpu.memory_space<vmem>>, vector<1x128xf32>
    tpu.vector_store %arg3[%c0_13, %c0_14], %19 {strides = array<i32>} : memref<1x128xf32, #tpu.memory_space<vmem>>, vector<1x128xf32>,
    return
  }
  func.func @transform_0(%arg0: i32) -> (i32, i32) {
    %c0_i32 = arith.constant 0 : i32
    %c0_i32_0 = arith.constant 0 : i32
    return %arg0, %c0_i32 : i32, i32
  }
  func.func @transform_1(%arg0: i32) -> (i32, i32) {
    %c0_i32 = arith.constant 0 : i32
    %c0_i32_0 = arith.constant 0 : i32
    %c0_i32_1 = arith.constant 0 : i32
    return %c0_i32, %c0_i32_0 : i32, i32
  }
  func.func @transform_2(%arg0: i32) -> (i32, i32) {
    %c0_i32 = arith.constant 0 : i32
    %c0_i32_0 = arith.constant 0 : i32
    return %c0_i32, %arg0 : i32, i32
  }
}

</mosaic_0001>

<llo_original>
// kernel: tpu_custom_call.1
$region0: #{tpu_custom_call.1}
  #allocation0 [shape = 'u32[]', space=smem, size = 0x4, offset = 0x4, fixed_abs, tag = 'smem constant byte address 0x4 - core index']
  #allocation1 [shape = 'u32[72,128]{1,0:T(1,128)}', space=vmem, size = 0x9000, scoped, tag = 'internal scratch']
  %s0 = inlined_call_operand.vmem [shape: f32[8,2], index: 0, kind: input, shape index: {}]
  %s1 = inlined_call_operand.vmem [shape: f32[56,33], index: 1, kind: input, shape index: {}]
  %s2 = inlined_call_operand.hbm [shape: f32[1,8], index: 2, kind: output, shape index: {}]
  %s3 = sld [smem:[#allocation0]]
  $region18: #{tpu_custom_call.1} parent=0
    _
  %s5 = ssub.s32 1, %s3
  %s6 = scalar_select 0, %s5, %s3
  $region1: #{tpu_custom_call.1} parent=0
    #allocation2 [shape = 'u8[512]{0}', space=vmem, size = 0x400, scoped, tag = 'output window, operand 0, single buffered']
    #allocation3 [shape = 's32[1]{0}', space=sflag, size = 0x4, scoped, tag = 'scoped memory for tpu_custom_call.1']
    %7 = vsyncpa [#allocation3], 0
    // Predicated region
    $region2: #{tpu_custom_call.1} parent=1 // pred_check
      _
    $region3: #{tpu_custom_call.1} parent=1 // pred_check_branch
      %9 = sbr.rel (0) target = $region5
    $region4: #{tpu_custom_call.1} parent=1 // pred_region
      _
    $region5: #{tpu_custom_call.1} parent=1 // pred_fallthru
      _
    // Predicated region
    $region6: #{tpu_custom_call.1} parent=1 // pred_check
      _
    $region7: #{tpu_custom_call.1} parent=1 // pred_check_branch
      %11 = sbr.rel (0) target = $region9
    $region8: #{tpu_custom_call.1} parent=1 // pred_region
      _
    $region9: #{tpu_custom_call.1} parent=1 // pred_fallthru
      _
    %v12 = vld [vmem:[%s1] sm:$0xff]
    %v13 = vld [vmem:[%s1 + $0x8] sm:$0xff]
    %v14 = vld [vmem:[%s1 + $0x10] sm:$0xff]
    %v15 = vld [vmem:[%s1 + $0x18] sm:$0xff]
    %v16 = vld [vmem:[%s1 + $0x20] sm:$0xff]
    %v17 = vld [vmem:[%s1 + $0x28] sm:$0xff]
    %v18 = vld [vmem:[%s1 + $0x30] sm:$0x1]
    %v19 = vld [vmem:[%s0] sm:$0xff]
    %v20 = vld [vmem:[%s0 + $0x8] sm:$0xff]
    %v21 = vld [vmem:[%s0 + $0x10] sm:$0xff]
    %v22 = vld [vmem:[%s0 + $0x18] sm:$0xff]
    %v23 = vld [vmem:[%s0 + $0x20] sm:$0xff]
    %v24 = vld [vmem:[%s0 + $0x28] sm:$0xff]
    %v25 = vld [vmem:[%s0 + $0x30] sm:$0xff]
    %v26 = vld [vmem:[%s0 + $0x38] sm:$0xff]
    %v27 = vld [vmem:[%s0 + $0x40] sm:$0xff]
    %v28 = vld [vmem:[%s0 + $0x48] sm:$0xff]
    %v29 = vld [vmem:[%s0 + $0x50] sm:$0xff]
    %v30 = vld [vmem:[%s0 + $0x58] sm:$0xff]
    %v31 = vld [vmem:[%s0 + $0x60] sm:$0xff]
    %v32 = vld [vmem:[%s0 + $0x68] sm:$0xff]
    %v33 = vld [vmem:[%s0 + $0x70] sm:$0xff]
    %v34 = vld [vmem:[%s0 + $0x78] sm:$0xff]
    %36 = vset.pattern.permute.xlu0 2
    %37 = vperm.xlu0 %36, %v12
    %v38 = vpop.permute.xlu0 %37
    %41 = vset.pattern.permute.xlu0 2
    %42 = vperm.xlu0 %41, %v13
    %v43 = vpop.permute.xlu0 %42
    %vm45 = vcmask 15360
    %v46 = vsel %vm45, %v12, 0
    %v48 = vsel %vm45, %v13, 0
    %v51 = vsel %vm45, %v19, 0
    %v54 = vsel %vm45, %v20, 0
    %v57 = vsel %vm45, %v21, 0
    %v60 = vsel %vm45, %v22, 0
    %v63 = vsel %vm45, %v23, 0
    %v66 = vsel %vm45, %v24, 0
    %v69 = vsel %vm45, %v25, 0
    %v72 = vsel %vm45, %v26, 0
    %v75 = vsel %vm45, %v27, 0
    %v78 = vsel %vm45, %v28, 0
    %v81 = vsel %vm45, %v29, 0
    %v84 = vsel %vm45, %v30, 0
    %v87 = vsel %vm45, %v31, 0
    %v90 = vsel %vm45, %v32, 0
    %v93 = vsel %vm45, %v33, 0
    %v96 = vsel %vm45, %v34, 0
    %98 = vmatpush.xpose.msra.mxu0 %v96
    %99 = vmatpush.xpose.msra.mxu0 %v93
    %100 = vmatpush.xpose.msra.mxu0 %v90
    %101 = vmatpush.xpose.msra.mxu0 %v87
    %102 = vmatpush.xpose.msra.mxu0 %v84
    %103 = vmatpush.xpose.msra.mxu0 %v81
    %104 = vmatpush.xpose.msra.mxu0 %v78
    %105 = vmatpush.xpose.msra.mxu0 %v75
    %106 = vmatpush.xpose.msra.mxu0 %v72
    %107 = vmatpush.xpose.msra.mxu0 %v69
    %108 = vmatpush.xpose.msra.mxu0 %v66
    %109 = vmatpush.xpose.msra.mxu0 %v63
    %110 = vmatpush.xpose.msra.mxu0 %v60
    %111 = vmatpush.xpose.msra.mxu0 %v57
    %112 = vmatpush.xpose.msra.mxu0 %v54
    %113 = vmatpush.xpose.msra.mxu0 %v51
    %114 = vmatmul.f32.gmra.mxu0 %v46
    %v115 = vpop.f32.mrf.mxu0
    %v116 = vadd.f32 %v38, %v115
    %117 = vmatmul.f32.gmra.mxu0 %v48
    %v118 = vpop.f32.mrf.mxu0
    %v119 = vadd.f32 %v43, %v118
    %120 = vdwg.mxu0
    %v121 = vmax.f32 %v116, 0.0
    %v122 = vmax.f32 %v119, 0.0
    %124 = vset.pattern.permute.xlu0 16
    %125 = vperm.xlu0 %124, %v14
    %v126 = vpop.permute.xlu0 %125
    %129 = vset.pattern.permute.xlu0 16
    %130 = vperm.xlu0 %129, %v15
    %v131 = vpop.permute.xlu0 %130
    %134 = vset.pattern.permute.xlu0 16
    %135 = vperm.xlu0 %134, %v16
    %v136 = vpop.permute.xlu0 %135
    %139 = vset.pattern.permute.xlu0 16
    %140 = vperm.xlu0 %139, %v17
    %v141 = vpop.permute.xlu0 %140
    %vm143 = vcmask 130048
    %v144 = vsel %vm143, %v14, 0
    %v146 = vsel %vm143, %v15, 0
    %v148 = vsel %vm143, %v16, 0
    %v150 = vsel %vm143, %v17, 0
    %152 = vmatpush.msra.mxu0 0.0
    %153 = vmatpush.msra.mxu0 0.0
    %154 = vmatpush.msra.mxu0 0.0
    %155 = vmatpush.msra.mxu0 0.0
    %156 = vmatpush.msra.mxu0 0.0
    %157 = vmatpush.msra.mxu0 0.0
    %158 = vmatpush.msra.mxu0 0.0
    %159 = vmatpush.msra.mxu0 0.0
    %160 = vmatpush.msra.mxu0 0.0
    %161 = vmatpush.msra.mxu0 0.0
    %162 = vmatpush.msra.mxu0 0.0
    %163 = vmatpush.msra.mxu0 0.0
    %164 = vmatpush.msra.mxu0 0.0
    %165 = vmatpush.msra.mxu0 0.0
    %166 = vmatpush.msra.mxu0 %v122
    %167 = vmatpush.msra.mxu0 %v121
    %168 = vmatmul.f32.gmra.mxu0 %v144
    %v169 = vpop.f32.mrf.mxu0
    %v170 = vadd.f32 %v126, %v169
    %171 = vmatmul.f32.gmra.mxu0 %v146
    %v172 = vpop.f32.mrf.mxu0
    %v173 = vadd.f32 %v131, %v172
    %174 = vmatmul.f32.gmra.mxu0 %v148
    %v175 = vpop.f32.mrf.mxu0
    %v176 = vadd.f32 %v136, %v175
    %177 = vmatmul.f32.gmra.mxu0 %v150
    %v178 = vpop.f32.mrf.mxu0
    %v179 = vadd.f32 %v141, %v178
    %180 = vdwg.mxu0
    %v181 = vmax.f32 %v170, 0.0
    %v182 = vmax.f32 %v173, 0.0
    %v183 = vmax.f32 %v176, 0.0
    %v184 = vmax.f32 %v179, 0.0
    %186 = vset.pattern.permute.xlu0 32
    %187 = vperm.xlu0 %186, %v18
    %v188 = vpop.permute.xlu0 %187
    %vm190 = vcmask 261120
    %v191 = vsel %vm190, %v18, 0
    %193 = vmatpush.msra.mxu0 0.0
    %194 = vmatpush.msra.mxu0 0.0
    %195 = vmatpush.msra.mxu0 0.0
    %196 = vmatpush.msra.mxu0 0.0
    %197 = vmatpush.msra.mxu0 0.0
    %198 = vmatpush.msra.mxu0 0.0
    %199 = vmatpush.msra.mxu0 0.0
    %200 = vmatpush.msra.mxu0 0.0
    %201 = vmatpush.msra.mxu0 0.0
    %202 = vmatpush.msra.mxu0 0.0
    %203 = vmatpush.msra.mxu0 0.0
    %204 = vmatpush.msra.mxu0 0.0
    %205 = vmatpush.msra.mxu0 %v184
    %206 = vmatpush.msra.mxu0 %v183
    %207 = vmatpush.msra.mxu0 %v182
    %208 = vmatpush.msra.mxu0 %v181
    %209 = vmatmul.f32.gmra.mxu0 %v191
    %v210 = vpop.f32.mrf.mxu0
    %v211 = vadd.f32 %v188, %v210
    %212 = vdwg.mxu0
    %213 = vst [vmem:[#allocation2] sm:$0x1] %v211
    // Predicated region
    $region10: #{tpu_custom_call.1} parent=1 // pred_check
      _
    $region11: #{tpu_custom_call.1} parent=1 // pred_check_branch
      %215 = sbr.rel (0) target = $region13
    $region12: #{tpu_custom_call.1} parent=1 // pred_region
      %217 = vsyncadd [#allocation3], 0
      %s219 = sshll.u32 [#allocation2], 4
      %s220 = int_to_ptr.vmem [resolvable:$true] %s219
      %s221 = sshll.u32 %s2, 4
      %s222 = int_to_ptr.hbm [resolvable:$true] %s221
      %224 = dma.vmem_to_hbm [thread:$0]  %s220, 16, %s222, [#allocation3]
    $region13: #{tpu_custom_call.1} parent=1 // pred_fallthru
      _
    // Predicated region
    $region14: #{tpu_custom_call.1} parent=1 // pred_check
      _
    $region15: #{tpu_custom_call.1} parent=1 // pred_check_branch
      %226 = sbr.rel (0) target = $region17
    $region16: #{tpu_custom_call.1} parent=1 // pred_region
      %228 = dma.done [#allocation3], 16
    $region17: #{tpu_custom_call.1} parent=1 // pred_fallthru
      _
    %229 = vsyncpa [#allocation3], 1

</llo_original>
